<compile_context>
chip_gen: v7x
topology: tpu7x:2x2x1
jax: 0.10.0
libtpu: 0.0.40
codegen_flags: <defaults>
</compile_context>

<pallas_src>
import jax
import jax.numpy as jnp
from jax.experimental import pallas as pl
from jax.experimental.pallas import tpu as pltpu

_LANES = 128


def _round_up(a: int, b: int) -> int:
    return ((a + b - 1) // b) * b


def _num_tensorcores() -> int:
    """Best-effort TensorCores-per-device count (v5e/v6e: 1, v7x: 2)."""
    try:
        info = pltpu.get_tpu_info()
        for attr in ("num_cores", "num_tensorcores", "tensorcore_count", "core_count"):
            v = getattr(info, attr, None)
            if isinstance(v, int) and v > 0:
                return v
    except Exception:
        pass
    try:
        dev = jax.devices()[0]
        for attr in ("num_cores", "core_count"):
            v = getattr(dev, attr, None)
            if isinstance(v, int) and v > 0:
                return v
    except Exception:
        pass
    return 1


def _mish_kernel(x_ref, o_ref):
    x = x_ref[...]
    xf = x.astype(jnp.float32)
    # PyTorch softplus uses threshold=20: for x > 20, softplus(x) ~= x and
    # tanh(x) ~= 1, so mish(x) ~= x.  Clamp the exp argument so the unselected
    # branch never overflows (t*(t+2) would overflow f32 near x ~ 44).
    t = jnp.exp(jnp.minimum(xf, 20.0))          # single EUP transcendental
    num = t * (t + 2.0)
    den = num + 2.0                             # always >= 2, safe to invert
    # tanh(softplus(x)) = t*(t+2) / (t*(t+2) + 2)
    inv = pl.reciprocal(den, approx=True)       # EUP vrcp (free bundle slot)
    inv = inv * (2.0 - den * inv)               # one Newton step -> ~full f32 precision
    y = jnp.where(xf > 20.0, xf, xf * num * inv)
    o_ref[...] = y.astype(o_ref.dtype)


def _mish_bulk(x2d: jax.Array, *, target_block_bytes: int, min_grid_steps: int) -> jax.Array:
    """Run the Pallas kernel over a lane-dense (rows, 128) slab."""
    rows, lanes = x2d.shape
    dtype = x2d.dtype
    itemsize = jnp.dtype(dtype).itemsize
    sub = max(8, 32 // itemsize)      # sublane packing: f32 -> 8, bf16 -> 16, i8 -> 32

    # Budget rows-per-block off the *f32* intermediate footprint (the kernel
    # upcasts), not the stored dtype.
    rows_per_target = max(sub, target_block_bytes // (lanes * 4))
    tr_target = max(sub, (rows_per_target // sub) * sub)
    tr_cap = max(sub, _round_up(pl.cdiv(rows, min_grid_steps), sub))
    # tr is either a multiple of `sub` (masked partial last block) or exactly
    # `rows` (full-extent block); both are legal tile shapes.
    tr = min(tr_target, tr_cap, rows)
    grid = (pl.cdiv(rows, tr),)

    block_bytes_stored = tr * lanes * itemsize
    block_bytes_f32 = tr * lanes * 4
    # in + out double-buffered (4x stored block) + allowance for any f32
    # temporaries Mosaic materializes in VMEM + headroom.  Floor/cap keep the
    # limit sane on every generation (v7x physical VMEM is only 64 MiB).
    vmem_limit = 4 * block_bytes_stored + 4 * block_bytes_f32 + (4 << 20)
    vmem_limit = int(min(max(vmem_limit, 16 << 20), 32 << 20))

    n = rows * lanes
    cost = pl.CostEstimate(
        flops=10 * n,
        transcendentals=2 * n,
        bytes_accessed=2 * n * itemsize,
    )

    return pl.pallas_call(
        _mish_kernel,
        out_shape=jax.ShapeDtypeStruct((rows, lanes), dtype),
        grid_spec=pltpu.PrefetchScalarGridSpec(
            num_scalar_prefetch=0,
            grid=grid,
            # NOTE(v7x): if xprof ever shows exposed DMA, prefer raising
            # target_block_bytes toward ~4 MiB before pipeline_mode=pl.Buffered(3).
            in_specs=[pl.BlockSpec((tr, lanes), lambda i: (i, 0))],
            out_specs=pl.BlockSpec((tr, lanes), lambda i: (i, 0)),
        ),
        compiler_params=pltpu.CompilerParams(
            dimension_semantics=("parallel",),
            vmem_limit_bytes=vmem_limit,
        ),
        cost_estimate=cost,
    )(x2d)


def _mish_xla(x: jax.Array) -> jax.Array:
    """Exact PyTorch-matching formula; used only for <128-element tails."""
    xf = x.astype(jnp.float32)
    return (xf * jnp.tanh(jax.nn.softplus(xf))).astype(x.dtype)


def mish(x: jax.Array, *, target_block_bytes: int = 2 << 20) -> jax.Array:
    """Elementwise Mish. Accepts any shape (e.g. NCHW); preserves shape/dtype."""
    orig_shape = x.shape
    n = x.size
    if n == 0:
        return x

    min_grid_steps = 2 * _num_tensorcores()   # 2 on v5e/v6e (1 TC), 4 on v7x (2 TCs)

    x_flat = x.reshape(-1)                    # contiguous reshape: metadata only
    tail = n % _LANES
    n_bulk = n - tail

    if n_bulk == 0:
        # Tiny input (< 128 elements): not worth a kernel launch.
        return _mish_xla(x_flat).reshape(orig_shape)

    x_bulk = x_flat[:n_bulk] if tail else x_flat
    rows = n_bulk // _LANES
    out_bulk = _mish_bulk(
        x_bulk.reshape(rows, _LANES),
        target_block_bytes=target_block_bytes,
        min_grid_steps=min_grid_steps,
    ).reshape(-1)

    if tail:
        # Ragged tail (< 128 elements): tiny XLA epilogue + one concat pass
        # instead of whole-tensor pad + slice passes.
        out_tail = _mish_xla(x_flat[n_bulk:])
        out_flat = jnp.concatenate([out_bulk, out_tail])
    else:
        out_flat = out_bulk

    return out_flat.reshape(orig_shape)


def _mish_ref(x):
    xf = x.astype(jnp.float32)
    return (xf * jnp.tanh(jax.nn.softplus(xf))).astype(x.dtype)


if __name__ == "__main__":
    key = jax.random.PRNGKey(0)

    # NCHW, consistent with typical conv-net usage of Mish (lane-aligned path).
    x = jax.random.normal(key, (2, 4, 16, 16), dtype=jnp.float32) * 3.0
    y = mish(x)
    jax.block_until_ready(y)
    y_ref = _mish_ref(x)
    assert y.shape == x.shape and y.dtype == x.dtype
    assert jnp.allclose(y, y_ref, atol=1e-5, rtol=1e-5), float(
        jnp.max(jnp.abs(y - y_ref))
    )

    # Ragged size (655 = 5*128 + 15): exercises the bulk-kernel + tail-epilogue path.
    xr = jax.random.normal(jax.random.PRNGKey(0), (5, 131), dtype=jnp.float32) * 3.0
    yr = mish(xr)
    jax.block_until_ready(yr)
    yr_ref = _mish_ref(xr)
    assert yr.shape == xr.shape and yr.dtype == xr.dtype
    assert jnp.allclose(yr, yr_ref, atol=1e-5, rtol=1e-5)

    # bf16 path (sublane packing 16, f32-intermediate VMEM budgeting).
    xb = x.astype(jnp.bfloat16)
    yb = mish(xb)
    jax.block_until_ready(yb)
    yb_ref = _mish_ref(xb)
    assert yb.shape == xb.shape and yb.dtype == xb.dtype
    assert jnp.allclose(yb.astype(jnp.float32), yb_ref.astype(jnp.float32),
                        atol=2e-2, rtol=2e-2)

    print("KERNEL_OK")
</pallas_src>

<mosaic_0001>
module attributes {stable_mosaic.version = 11 : i64} {
  func.func @_mish_kernel(%arg0: i32, %arg1: memref<8x128xf32, #tpu.memory_space<vmem>>, %arg2: memref<8x128xf32, #tpu.memory_space<vmem>>) attributes {dimension_semantics = [#tpu.dimension_semantics<parallel>], iteration_bounds = array<i64: 2>, scalar_prefetch = 0 : i64, scratch_operands = 0 : i64, tpu.core_type = #tpu.core_type<tc>, window_params = [{transform_indices = @transform_0, window_bounds = array<i64: 8, 128>}, {transform_indices = @transform_1, window_bounds = array<i64: 8, 128>}]} {
    %c0 = arith.constant 0 : index
    %c0_0 = arith.constant 0 : index
    %0 = vector.load %arg1[%c0, %c0_0] : memref<8x128xf32, #tpu.memory_space<vmem>>, vector<8x128xf32>
    %cst = arith.constant 2.000000e+01 : f32
    %1 = vector.broadcast %cst : f32 to vector<8x128xf32>
    %2 = arith.minimumf %0, %1 : vector<8x128xf32>
    %3 = math.exp %2 : vector<8x128xf32>
    %cst_1 = arith.constant 2.000000e+00 : f32
    %4 = vector.broadcast %cst_1 : f32 to vector<8x128xf32>
    %5 = arith.addf %3, %4 : vector<8x128xf32>
    %6 = arith.mulf %3, %5 : vector<8x128xf32>
    %cst_2 = arith.constant 2.000000e+00 : f32
    %7 = vector.broadcast %cst_2 : f32 to vector<8x128xf32>
    %8 = arith.addf %6, %7 : vector<8x128xf32>
    %9 = tpu.reciprocal %8 {approx = true} : vector<8x128xf32> -> vector<8x128xf32>
    %10 = arith.mulf %8, %9 : vector<8x128xf32>
    %cst_3 = arith.constant 2.000000e+00 : f32
    %11 = vector.broadcast %cst_3 : f32 to vector<8x128xf32>
    %12 = arith.subf %11, %10 : vector<8x128xf32>
    %13 = arith.mulf %9, %12 : vector<8x128xf32>
    %cst_4 = arith.constant 2.000000e+01 : f32
    %14 = vector.broadcast %cst_4 : f32 to vector<8x128xf32>
    %15 = arith.cmpf ogt, %0, %14 : vector<8x128xf32>
    %16 = arith.mulf %0, %6 : vector<8x128xf32>
    %17 = arith.mulf %16, %13 : vector<8x128xf32>
    %18 = arith.select %15, %0, %17 : vector<8x128xi1>, vector<8x128xf32>
    %c0_5 = arith.constant 0 : index
    %c0_6 = arith.constant 0 : index
    %19 = vector.load %arg2[%c0_5, %c0_6] : memref<8x128xf32, #tpu.memory_space<vmem>>, vector<8x128xf32>
    tpu.vector_store %arg2[%c0_5, %c0_6], %18 {strides = array<i32>} : memref<8x128xf32, #tpu.memory_space<vmem>>, vector<8x128xf32>,
    return
  }
  func.func @transform_0(%arg0: i32) -> (i32, i32) {
    %c0_i32 = arith.constant 0 : i32
    %c0_i32_0 = arith.constant 0 : i32
    return %arg0, %c0_i32 : i32, i32
  }
  func.func @transform_1(%arg0: i32) -> (i32, i32) {
    %c0_i32 = arith.constant 0 : i32
    %c0_i32_0 = arith.constant 0 : i32
    return %arg0, %c0_i32 : i32, i32
  }
}

</mosaic_0001>

<llo_original>
// kernel: tpu_custom_call.1
$region0: #{tpu_custom_call.1}
  #allocation0 [shape = 'u32[]', space=smem, size = 0x4, offset = 0x4, fixed_abs, tag = 'smem constant byte address 0x4 - core index']
  #allocation1 [shape = 'u32[144,128]{1,0:T(1,128)}', space=vmem, size = 0x12000, scoped, tag = 'internal scratch']
  %s0 = inlined_call_operand.hbm [shape: f32[16,128], index: 0, kind: input, shape index: {}]
  %s1 = inlined_call_operand.hbm [shape: f32[16,128], index: 1, kind: output, shape index: {}]
  %s2 = sld [smem:[#allocation0]]
  $region41: #{tpu_custom_call.1} parent=0
    _
  %s4 = ssub.s32 1, %s2
  %s5 = scalar_select 0, %s4, %s2
  $region1: #{tpu_custom_call.1} parent=0
    #allocation2 [shape = 'u8[8192]{0}', space=vmem, size = 0x2000, scoped, tag = 'input window, operand 0']
    #allocation3 [shape = 's32[2]{0}', space=sflag, size = 0x8, scoped, tag = 'scoped memory for tpu_custom_call.1']
    #allocation4 [shape = 's32[2]{0}', space=sflag, size = 0x8, scoped, tag = 'scoped memory for tpu_custom_call.1']
    #allocation5 [shape = 'u8[8192]{0}', space=vmem, size = 0x2000, scoped, tag = 'output window, operand 0']
    %6 = vsyncpa [#allocation3], 0
    %s7 = scalar_lea.sflag [#allocation3], 1
    %8 = vsyncpa %s7, 0
    %9 = vsyncpa [#allocation4], 0
    %s10 = scalar_lea.sflag [#allocation4], 1
    %11 = vsyncpa %s10, 0
    loop: start=0, step=1, limit=4
    $region2: #{tpu_custom_call.1} parent=1 // loop_pre_header
      _
    $region3: #{tpu_custom_call.1} parent=1 // loop_header
      %s13 = sphi 0, %s17
      %p14 = scmp.ge.s32.totalorder %s13, 4
      %s23 = sphi 0, %s25
      %s26 = sphi 0, %s23
      %s27 = sphi 0, %s26
      %s43 = sphi 0, %s27
      %s49 = sphi 0, %s51
      %s52 = sphi 0, %s49
      %s53 = sphi 0, %s52
      %s69 = sphi 0, %s53
    $region4: #{tpu_custom_call.1} parent=1 // loop_header_branch
      %16 = sbr.rel (%p14) target = $region8
    $region5: #{tpu_custom_call.1} parent=1 // loop_body
      %s18 = ssub.s32 %s13, 1
      %s19 = ssub.s32 %s13, 2
      %s20 = sadd.s32 %s13, 1
      %s21 = ssub.s32 %s13, %s20
      %p22 = scmp.eq.s32.totalorder %s21, 0
      %s24 = sadd.s32 %s23, 1
      %s25 = scalar_select %p22, %s23, %s24
      %p28 = pneg %p22
      %p29 = scmp.eq.s32.totalorder %s13, 1
      %p30 = por %p28, %p29
      %p31 = scmp.ne.s32.totalorder %s23, %s26
      %p32 = scmp.eq.s32.totalorder %s13, 0
      %p33 = por %p31, %p32
      %p34 = scmp.ne.s32.totalorder %s23, %s26
      %p35 = scmp.eq.s32.totalorder %s18, 1
      %p36 = por %p34, %p35
      %p37 = scmp.ne.s32.totalorder %s26, %s27
      %p38 = scmp.eq.s32.totalorder %s18, 0
      %p39 = por %p37, %p38
      %p40 = scmp.ne.s32.totalorder %s26, %s27
      %p41 = scmp.eq.s32.totalorder %s19, 1
      %p42 = por %p40, %p41
      %p44 = scmp.ne.s32.totalorder %s27, %s43
      %p45 = scmp.eq.s32.totalorder %s19, 0
      %p46 = por %p44, %p45
      %s47 = ssub.s32 %s13, %s20
      %p48 = scmp.eq.s32.totalorder %s47, 0
      %s50 = sadd.s32 %s49, 1
      %s51 = scalar_select %p48, %s49, %s50
      %p54 = pneg %p48
      %p55 = scmp.eq.s32.totalorder %s13, 1
      %p56 = por %p54, %p55
      %p57 = scmp.ne.s32.totalorder %s49, %s52
      %p58 = scmp.eq.s32.totalorder %s13, 0
      %p59 = por %p57, %p58
      %p60 = scmp.ne.s32.totalorder %s49, %s52
      %p61 = scmp.eq.s32.totalorder %s18, 1
      %p62 = por %p60, %p61
      %p63 = scmp.ne.s32.totalorder %s52, %s53
      %p64 = scmp.eq.s32.totalorder %s18, 0
      %p65 = por %p63, %p64
      %p66 = scmp.ne.s32.totalorder %s52, %s53
      %p67 = scmp.eq.s32.totalorder %s19, 1
      %p68 = por %p66, %p67
      %p70 = scmp.ne.s32.totalorder %s53, %s69
      %p71 = scmp.eq.s32.totalorder %s19, 0
      %p72 = por %p70, %p71
      %p73 = scmp.le.s32.totalorder 1, %s13
      %p74 = scmp.lt.s32.totalorder %s13, 3
      %p75 = pnand %p73, %p74
      %p76 = pneg %p75
      // Predicated region
      $region9: #{tpu_custom_call.1} parent=5 // pred_check
        _
      $region10: #{tpu_custom_call.1} parent=5 // pred_check_branch
        %78 = sbr.rel (%p75) target = $region12
      $region11: #{tpu_custom_call.1} parent=5 // pred_region
        %s79 = ssub.s32 %s13, 1
      $region12: #{tpu_custom_call.1} parent=5 // pred_fallthru
        _
      %p80 = scmp.lt.s32.totalorder %s13, 2
      // Predicated region
      $region13: #{tpu_custom_call.1} parent=5 // pred_check
        %p81 = pneg %p80
      $region14: #{tpu_custom_call.1} parent=5 // pred_check_branch
        %83 = sbr.rel (%p81) target = $region16
      $region15: #{tpu_custom_call.1} parent=5 // pred_region
        // Predicated region
        $region17: #{tpu_custom_call.1} parent=15 // pred_check
          %p84 = pneg %p33
        $region18: #{tpu_custom_call.1} parent=15 // pred_check_branch
          %86 = sbr.rel (%p84) target = $region20
        $region19: #{tpu_custom_call.1} parent=15 // pred_region
          %s87 = sand.u32 %s23, 1
          %s88 = scalar_lea.sflag [#allocation3], %s87
          %s89 = sand.u32 %s23, 1
          %s90 = smul.addr %s89, 8
          %s91 = scalar_lea.vmem [#allocation2], %s90
          %s93 = ssub.s32 128, 128
          %94 = vsyncadd %s88, %s93
          %s95 = smul.addr %s13, 128
          %s96 = scalar_lea.hbm %s0, %s95
          %s98 = sshll.u32 %s91, 4
          %s99 = int_to_ptr.vmem [resolvable:$true] %s98
          %101 = dma.hbm_to_vmem [thread:$0]  %s96, 128, %s99, %s88
        $region20: #{tpu_custom_call.1} parent=15 // pred_fallthru
          _
      $region16: #{tpu_custom_call.1} parent=5 // pred_fallthru
        _
      %p102 = scmp.le.s32.totalorder 1, %s13
      %p103 = scmp.lt.s32.totalorder %s13, 3
      %p104 = pnand %p102, %p103
      %p105 = pneg %p104
      // Predicated region
      $region21: #{tpu_custom_call.1} parent=5 // pred_check
        _
      $region22: #{tpu_custom_call.1} parent=5 // pred_check_branch
        %107 = sbr.rel (%p104) target = $region24
      $region23: #{tpu_custom_call.1} parent=5 // pred_region
        %s108 = ssub.s32 %s13, 1
        %s109 = sand.u32 %s26, 1
        %s110 = scalar_lea.sflag [#allocation3], %s109
        %s111 = sand.u32 %s26, 1
        %s112 = smul.addr %s111, 8
        %s113 = scalar_lea.vmem [#allocation2], %s112
        // Predicated region
        $region25: #{tpu_custom_call.1} parent=23 // pred_check
          %p114 = pneg %p39
        $region26: #{tpu_custom_call.1} parent=23 // pred_check_branch
          %116 = sbr.rel (%p114) target = $region28
        $region27: #{tpu_custom_call.1} parent=23 // pred_region
          %117 = dma.done %s110, 128
        $region28: #{tpu_custom_call.1} parent=23 // pred_fallthru
          _
        %s118 = sand.u32 %s26, 1
        %s119 = scalar_lea.sflag [#allocation3], %s118
        %s120 = sand.u32 %s26, 1
        %s121 = smul.addr %s120, 8
        %s122 = scalar_lea.vmem [#allocation2], %s121
        %p123 = pneg %p39
        %p124 = pneg %p36
        %p125 = pneg %p65
        %p126 = pneg %p62
        %s127 = sand.u32 %s52, 1
        %s128 = scalar_lea.sflag [#allocation4], %s127
        %s129 = sand.u32 %s52, 1
        %s130 = smul.addr %s129, 8
        %s131 = scalar_lea.vmem [#allocation5], %s130
        %v132 = vld [vmem:[%s113] sm:$0xff]
        %v133 = vmin.f32 %v132, 20.0
        %v134 = vmul.f32 %v133, 1.442695
        %v135 = vpow.pop %v134
        %v136 = vadd.f32 %v135, 2.0
        %v137 = vmul.f32 %v135, %v136
        %v138 = vadd.f32 %v137, 2.0
        %v139 = vrcp.pop %v138
        %v140 = vmul.f32 %v138, %v139
        %v141 = vsub.f32 2.0, %v140
        %v142 = vmul.f32 %v139, %v141
        %vm143 = vcmp.gt.f32.partialorder %v132, 20.0
        %v144 = vmul.f32 %v132, %v137
        %v145 = vmul.f32 %v144, %v142
        %v146 = vsel %vm143, %v132, %v145
        %147 = vst [vmem:[%s131] sm:$0xff] %v146
        %s148 = sand.u32 %s52, 1
        %s149 = scalar_lea.sflag [#allocation4], %s148
        %s150 = sand.u32 %s52, 1
        %s151 = smul.addr %s150, 8
        %s152 = scalar_lea.vmem [#allocation5], %s151
        // Predicated region
        $region29: #{tpu_custom_call.1} parent=23 // pred_check
          %p153 = pneg %p62
        $region30: #{tpu_custom_call.1} parent=23 // pred_check_branch
          %155 = sbr.rel (%p153) target = $region32
        $region31: #{tpu_custom_call.1} parent=23 // pred_region
          %s157 = ssub.s32 128, 128
          %158 = vsyncadd %s149, %s157
          %s159 = smul.addr %s18, 128
          %s160 = scalar_lea.hbm %s1, %s159
          %s162 = sshll.u32 %s152, 4
          %s163 = int_to_ptr.vmem [resolvable:$true] %s162
          %165 = dma.vmem_to_hbm [thread:$0]  %s163, 128, %s160, %s149
        $region32: #{tpu_custom_call.1} parent=23 // pred_fallthru
          _
      $region24: #{tpu_custom_call.1} parent=5 // pred_fallthru
        _
      %p166 = scmp.le.s32.totalorder 2, %s13
      // Predicated region
      $region33: #{tpu_custom_call.1} parent=5 // pred_check
        %p167 = pneg %p166
      $region34: #{tpu_custom_call.1} parent=5 // pred_check_branch
        %169 = sbr.rel (%p167) target = $region36
      $region35: #{tpu_custom_call.1} parent=5 // pred_region
        %s170 = ssub.s32 %s13, 2
        // Predicated region
        $region37: #{tpu_custom_call.1} parent=35 // pred_check
          %p171 = pneg %p68
        $region38: #{tpu_custom_call.1} parent=35 // pred_check_branch
          %173 = sbr.rel (%p171) target = $region40
        $region39: #{tpu_custom_call.1} parent=35 // pred_region
          %s174 = sand.u32 %s53, 1
          %s175 = scalar_lea.sflag [#allocation4], %s174
          %s176 = sand.u32 %s53, 1
          %s177 = smul.addr %s176, 8
          %s178 = scalar_lea.vmem [#allocation5], %s177
          %179 = dma.done %s175, 128
        $region40: #{tpu_custom_call.1} parent=35 // pred_fallthru
          _
      $region36: #{tpu_custom_call.1} parent=5 // pred_fallthru
        _
    $region6: #{tpu_custom_call.1} parent=1 // loop_footer
      %s17 = sadd.s32 1, %s13
    $region7: #{tpu_custom_call.1} parent=1 // loop_footer_branch
      %12 = sbr.rel target = $region3
    $region8: #{tpu_custom_call.1} parent=1 // loop_exit
      _
    %180 = vsyncpa [#allocation3], 1
    %s181 = scalar_lea.sflag [#allocation3], 1
    %182 = vsyncpa %s181, 1
    %183 = vsyncpa [#allocation4], 1
    %s184 = scalar_lea.sflag [#allocation4], 1
    %185 = vsyncpa %s184, 1

</llo_original>
